<compile_context>
chip_gen: v7x
topology: tpu7x:2x2x1
jax: 0.10.0
libtpu: 0.0.40
codegen_flags: <defaults>
</compile_context>

<pallas_src>
import functools

import jax
import jax.numpy as jnp
from jax import lax
from jax.experimental import pallas as pl
from jax.experimental.pallas import tpu as pltpu


def basic_block_kernel(x_ref, w1_ref, b1_ref, w2_ref, b2_ref, o_ref, *, H, no_relu):
    """One band of NB whole images (R = NB*H rows) per grid step.

    x_ref  : (R, W*C1)       lane-dense rows, image-major / row-major
    w1_ref : (3*W*C1, W*C2)  conv1 band weight (BN1 scale folded), [kh=0|1|2]
    b1_ref : (1, W*C2)       BN1 bias tiled across W
    w2_ref : (3*W*C2, W*C2)  conv2 band weight (BN2 scale folded)
    b2_ref : (1, W*C2)       BN2 bias tiled across W
    o_ref  : (R, W*C2)
    """
    R = x_ref.shape[0]
    x0 = x_ref[...]                                           # (R, W*C1)

    # Per-row halo mask: row h of an image may only read rows h-1 / h+1 of the
    # SAME image (block boundaries are aligned to image boundaries).
    row = lax.broadcasted_iota(jnp.int32, (R, 1), 0) % H
    top_ok = row > 0
    bot_ok = row < H - 1

    def conv3x3(inp, w_ref):
        # out[r] = inp[r-1] @ W[kh=0] + inp[r] @ W[kh=1] + inp[r+1] @ W[kh=2]
        # Sublane shifts via pltpu.roll (XLU) + VPU mask; the three shifted
        # copies are concatenated along lanes (128-aligned => no cross-lane
        # movement) so the whole 3x3 conv is a single MXU matmul with
        # K = 3*W*Cin, accumulated in f32 inside the MXU.
        up = jnp.where(top_ok, pltpu.roll(inp, shift=1, axis=0), 0.0)        # inp[r-1]
        down = jnp.where(bot_ok, pltpu.roll(inp, shift=R - 1, axis=0), 0.0)  # inp[r+1]
        stacked = jnp.concatenate([up, inp, down], axis=-1)                  # (R, 3*W*Cin)
        return jnp.dot(stacked, w_ref[...], preferred_element_type=jnp.float32)

    # conv1 + bn1 (scale folded into w1, bias here) + relu
    out1 = jnp.maximum(conv3x3(x0, w1_ref) + b1_ref[...], 0.0)               # (R, W*C2)

    # conv2 + bn2 + residual add (identity == x0 since s=1, no downsample)
    out2 = conv3x3(out1, w2_ref) + b2_ref[...] + x0
    o_ref[...] = out2 if no_relu else jnp.maximum(out2, 0.0)


def _band_weight(w_hwio, W):
    """(3,3,Cin,Cout) HWIO conv weight -> (3*W*Cin, W*Cout) block-banded matrix.

    band[kh*W*Cin + (w+kw-1)*Cin + ci, w*Cout + co] = w_hwio[kh, kw, ci, co]
    (entries with w+kw-1 outside [0, W) stay zero == W-direction zero padding).
    Built exactly with kron against shifted identities (no matmul rounding).
    """
    KH, KW, Cin, Cout = w_hwio.shape
    mats = []
    for kh in range(KH):
        m = jnp.zeros((W * Cin, W * Cout), w_hwio.dtype)
        for kw in range(KW):
            m = m + jnp.kron(jnp.eye(W, k=1 - kw, dtype=w_hwio.dtype), w_hwio[kh, kw])
        mats.append(m)
    return jnp.concatenate(mats, axis=0)                      # (3*W*Cin, W*Cout)


def _pick_images_per_block(N, H, target_rows=256):
    """Largest divisor NB of N with NB*H <= target_rows, keeping >=2 grid steps
    when the batch allows (pipelining / v7x core sharding)."""
    best = 1
    for nb in range(1, N + 1):
        if N % nb == 0 and nb * H <= target_rows:
            best = nb
    while best > 1 and N // best < 2:
        nb = best - 1
        while nb > 1 and N % nb != 0:
            nb -= 1
        best = nb
    return best


def basic_block_forward(x_nhwc, w1, s1, b1, w2, s2, b2, *, no_relu=False):
    """x_nhwc: (N, H, W, C1) f32; conv weights HWIO; s*/b* folded BN scale/bias.

    Returns (N, H, W, C2) f32.  Requires C1 == C2 (identity residual path).
    """
    N, H, W, C1 = x_nhwc.shape
    C2 = w1.shape[-1]
    assert C1 == C2, "identity path (s=1, downsample=None) requires c1 == c2"
    WC1, WC2 = W * C1, W * C2

    f32 = jnp.float32
    # Fold BN scale into the conv weights (per output channel), build band mats.
    w1b = _band_weight(w1.astype(f32) * s1.astype(f32)[None, None, None, :], W)
    w2b = _band_weight(w2.astype(f32) * s2.astype(f32)[None, None, None, :], W)
    # Bias tiled across W so it broadcasts over the lane-dense (R, W*C2) layout.
    b1t = jnp.tile(b1.astype(f32), W).reshape(1, WC2)
    b2t = jnp.tile(b2.astype(f32), W).reshape(1, WC2)

    NB = _pick_images_per_block(N, H)
    R = NB * H
    assert R % 8 == 0, "rows per block must be sublane-aligned (H*NB % 8 == 0)"

    # Trivial contiguous reshape (H, W, C are adjacent trailing dims): no pad,
    # no transpose -- the identity/residual is the same buffer the conv reads.
    x_flat = x_nhwc.astype(f32).reshape(N * H, WC1)

    kernel = functools.partial(basic_block_kernel, H=H, no_relu=no_relu)

    out_flat = pl.pallas_call(
        kernel,
        out_shape=jax.ShapeDtypeStruct((N * H, WC2), f32),
        grid_spec=pltpu.PrefetchScalarGridSpec(
            num_scalar_prefetch=0,
            grid=(N // NB,),
            in_specs=[
                pl.BlockSpec((R, WC1), lambda n: (n, 0)),
                pl.BlockSpec((3 * WC1, WC2), lambda n: (0, 0)),
                pl.BlockSpec((1, WC2), lambda n: (0, 0)),
                pl.BlockSpec((3 * WC2, WC2), lambda n: (0, 0)),
                pl.BlockSpec((1, WC2), lambda n: (0, 0)),
            ],
            out_specs=pl.BlockSpec((R, WC2), lambda n: (n, 0)),
        ),
        compiler_params=pltpu.CompilerParams(dimension_semantics=("parallel",)),
    )(x_flat, w1b, b1t, w2b, b2t)

    return out_flat.reshape(N, H, W, C2)


def _fold_bn(gamma, beta, mean, var, eps=1e-5):
    scale = gamma / jnp.sqrt(var + eps)
    bias = beta - mean * scale
    return scale, bias


def _conv3x3_ref(x, w):
    return lax.conv_general_dilated(
        x, w, window_strides=(1, 1), padding=((1, 1), (1, 1)),
        dimension_numbers=("NHWC", "HWIO", "NHWC"))


if __name__ == "__main__":
    # Small shapes consistent with the module: c1=c2=8, H=W=16, s=1.
    # W*C = 128 -> exactly one lane tile; NB=2 images per grid step -> 2 steps.
    N, H, W, C = 4, 16, 16, 8
    key = jax.random.PRNGKey(0)
    ks = jax.random.split(key, 12)

    x = jax.random.normal(ks[0], (N, H, W, C), dtype=jnp.float32)

    # conv weights (HWIO), no bias — deterministic synthetic init
    w1 = 0.1 * jax.random.normal(ks[1], (3, 3, C, C), dtype=jnp.float32)
    w2 = 0.1 * jax.random.normal(ks[2], (3, 3, C, C), dtype=jnp.float32)

    # BatchNorm parameters (inference mode, running stats)
    g1 = 0.5 + jax.random.uniform(ks[3], (C,), dtype=jnp.float32)
    beta1 = 0.1 * jax.random.normal(ks[4], (C,), dtype=jnp.float32)
    m1 = 0.1 * jax.random.normal(ks[5], (C,), dtype=jnp.float32)
    v1 = 0.5 + jax.random.uniform(ks[6], (C,), dtype=jnp.float32)

    g2 = 0.5 + jax.random.uniform(ks[7], (C,), dtype=jnp.float32)
    beta2 = 0.1 * jax.random.normal(ks[8], (C,), dtype=jnp.float32)
    m2 = 0.1 * jax.random.normal(ks[9], (C,), dtype=jnp.float32)
    v2 = 0.5 + jax.random.uniform(ks[10], (C,), dtype=jnp.float32)

    s1, b1 = _fold_bn(g1, beta1, m1, v1)
    s2, b2 = _fold_bn(g2, beta2, m2, v2)

    out = basic_block_forward(x, w1, s1, b1, w2, s2, b2)
    out = jax.block_until_ready(out)

    # pure-JAX reference (same folded-BN inference semantics)
    ref1 = jnp.maximum(_conv3x3_ref(x, w1) * s1 + b1, 0.0)
    ref2 = _conv3x3_ref(ref1, w2) * s2 + b2
    ref = jnp.maximum(ref2 + x, 0.0)

    if not jnp.allclose(out, ref, rtol=1e-3, atol=1e-3):
        raise AssertionError("Pallas kernel mismatch vs JAX reference")

    print("KERNEL_OK")
</pallas_src>

<mosaic_0001>
module attributes {stable_mosaic.version = 11 : i64} {
  func.func @basic_block_kernel(%arg0: i32, %arg1: memref<32x128xf32, #tpu.memory_space<vmem>>, %arg2: memref<384x128xf32, #tpu.memory_space<vmem>>, %arg3: memref<1x128xf32, #tpu.memory_space<vmem>>, %arg4: memref<384x128xf32, #tpu.memory_space<vmem>>, %arg5: memref<1x128xf32, #tpu.memory_space<vmem>>, %arg6: memref<32x128xf32, #tpu.memory_space<vmem>>) attributes {dimension_semantics = [#tpu.dimension_semantics<parallel>], iteration_bounds = array<i64: 2>, scalar_prefetch = 0 : i64, scratch_operands = 0 : i64, tpu.core_type = #tpu.core_type<tc>, window_params = [{transform_indices = @transform_0, window_bounds = array<i64: 32, 128>}, {pipeline_mode = #tpu.pipeline_mode<synchronous>, transform_indices = @transform_1, window_bounds = array<i64: 384, 128>}, {pipeline_mode = #tpu.pipeline_mode<synchronous>, transform_indices = @transform_2, window_bounds = array<i64: 1, 128>}, {pipeline_mode = #tpu.pipeline_mode<synchronous>, transform_indices = @transform_3, window_bounds = array<i64: 384, 128>}, {pipeline_mode = #tpu.pipeline_mode<synchronous>, transform_indices = @transform_4, window_bounds = array<i64: 1, 128>}, {transform_indices = @transform_5, window_bounds = array<i64: 32, 128>}]} {
    %c0 = arith.constant 0 : index
    %c0_0 = arith.constant 0 : index
    %0 = vector.load %arg1[%c0, %c0_0] : memref<32x128xf32, #tpu.memory_space<vmem>>, vector<32x128xf32>
    %1 = tpu.iota {dimensions = array<i32: 0>} : vector<32x1xi32>
    %c16_i32 = arith.constant 16 : i32
    %c0_i32 = arith.constant 0 : i32
    %2 = arith.cmpi eq, %c16_i32, %c0_i32 : i32
    %c1_i32 = arith.constant 1 : i32
    %3 = arith.select %2, %c1_i32, %c16_i32 : i32
    %4 = vector.broadcast %3 : i32 to vector<32x1xi32>
    %5 = arith.remsi %1, %4 : vector<32x1xi32>
    %c0_i32_1 = arith.constant 0 : i32
    %6 = vector.broadcast %c0_i32_1 : i32 to vector<32x1xi32>
    %7 = arith.cmpi ne, %5, %6 : vector<32x1xi32>
    %c0_i32_2 = arith.constant 0 : i32
    %8 = vector.broadcast %c0_i32_2 : i32 to vector<32x1xi32>
    %9 = arith.cmpi slt, %5, %8 : vector<32x1xi32>
    %c0_i32_3 = arith.constant 0 : i32
    %10 = arith.cmpi slt, %3, %c0_i32_3 : i32
    %11 = vector.broadcast %10 : i1 to vector<32x1xi1>
    %12 = vector.broadcast %11 : vector<32x1xi1> to vector<32x1xi1>
    %13 = arith.xori %9, %12 : vector<32x1xi1>
    %14 = arith.andi %13, %7 : vector<32x1xi1>
    %15 = vector.broadcast %3 : i32 to vector<32x1xi32>
    %16 = arith.addi %5, %15 : vector<32x1xi32>
    %17 = arith.select %14, %16, %5 : vector<32x1xi1>, vector<32x1xi32>
    %c0_i32_4 = arith.constant 0 : i32
    %18 = vector.broadcast %c0_i32_4 : i32 to vector<32x1xi32>
    %19 = arith.cmpi sgt, %17, %18 : vector<32x1xi32>
    %c15_i32 = arith.constant 15 : i32
    %20 = vector.broadcast %c15_i32 : i32 to vector<32x1xi32>
    %21 = arith.cmpi slt, %17, %20 : vector<32x1xi32>
    %c1_i32_5 = arith.constant 1 : i32
    %22 = tpu.dynamic_rotate %0 by %c1_i32_5 dim 0 : vector<32x128xf32>, i32 -> vector<32x128xf32>
    %cst = arith.constant 0.000000e+00 : f32
    %23 = vector.shape_cast %19 : vector<32x1xi1> to vector<32x1xi1>
    %24 = vector.broadcast %23 : vector<32x1xi1> to vector<32x128xi1>
    %25 = vector.broadcast %cst : f32 to vector<32x128xf32>
    %26 = arith.select %24, %22, %25 : vector<32x128xi1>, vector<32x128xf32>
    %c31_i32 = arith.constant 31 : i32
    %27 = tpu.dynamic_rotate %0 by %c31_i32 dim 0 : vector<32x128xf32>, i32 -> vector<32x128xf32>
    %cst_6 = arith.constant 0.000000e+00 : f32
    %28 = vector.shape_cast %21 : vector<32x1xi1> to vector<32x1xi1>
    %29 = vector.broadcast %28 : vector<32x1xi1> to vector<32x128xi1>
    %30 = vector.broadcast %cst_6 : f32 to vector<32x128xf32>
    %31 = arith.select %29, %27, %30 : vector<32x128xi1>, vector<32x128xf32>
    %32 = tpu.concatenate %26, %0, %31 in 1 : vector<32x128xf32>, vector<32x128xf32>, vector<32x128xf32> -> vector<32x384xf32>
    %c0_7 = arith.constant 0 : index
    %c0_8 = arith.constant 0 : index
    %33 = vector.load %arg2[%c0_7, %c0_8] : memref<384x128xf32, #tpu.memory_space<vmem>>, vector<384x128xf32>
    %cst_9 = arith.constant dense<0.000000e+00> : vector<32x128xf32>
    %34 = tpu.matmul %32, %33, %cst_9 {dimension_numbers = #tpu.dot_dimension_numbers<[1], [0], [0], [1], [0, 0, 1, 1], [], []>} : vector<32x384xf32>, vector<384x128xf32>, vector<32x128xf32> -> vector<32x128xf32>
    %c0_10 = arith.constant 0 : index
    %c0_11 = arith.constant 0 : index
    %35 = vector.load %arg3[%c0_10, %c0_11] : memref<1x128xf32, #tpu.memory_space<vmem>>, vector<1x128xf32>
    %36 = vector.broadcast %35 : vector<1x128xf32> to vector<32x128xf32>
    %37 = arith.addf %34, %36 : vector<32x128xf32>
    %cst_12 = arith.constant 0.000000e+00 : f32
    %38 = vector.broadcast %cst_12 : f32 to vector<32x128xf32>
    %39 = arith.maximumf %37, %38 : vector<32x128xf32>
    %c1_i32_13 = arith.constant 1 : i32
    %40 = tpu.dynamic_rotate %39 by %c1_i32_13 dim 0 : vector<32x128xf32>, i32 -> vector<32x128xf32>
    %cst_14 = arith.constant 0.000000e+00 : f32
    %41 = vector.shape_cast %19 : vector<32x1xi1> to vector<32x1xi1>
    %42 = vector.broadcast %41 : vector<32x1xi1> to vector<32x128xi1>
    %43 = vector.broadcast %cst_14 : f32 to vector<32x128xf32>
    %44 = arith.select %42, %40, %43 : vector<32x128xi1>, vector<32x128xf32>
    %c31_i32_15 = arith.constant 31 : i32
    %45 = tpu.dynamic_rotate %39 by %c31_i32_15 dim 0 : vector<32x128xf32>, i32 -> vector<32x128xf32>
    %cst_16 = arith.constant 0.000000e+00 : f32
    %46 = vector.shape_cast %21 : vector<32x1xi1> to vector<32x1xi1>
    %47 = vector.broadcast %46 : vector<32x1xi1> to vector<32x128xi1>
    %48 = vector.broadcast %cst_16 : f32 to vector<32x128xf32>
    %49 = arith.select %47, %45, %48 : vector<32x128xi1>, vector<32x128xf32>
    %50 = tpu.concatenate %44, %39, %49 in 1 : vector<32x128xf32>, vector<32x128xf32>, vector<32x128xf32> -> vector<32x384xf32>
    %c0_17 = arith.constant 0 : index
    %c0_18 = arith.constant 0 : index
    %51 = vector.load %arg4[%c0_17, %c0_18] : memref<384x128xf32, #tpu.memory_space<vmem>>, vector<384x128xf32>
    %cst_19 = arith.constant dense<0.000000e+00> : vector<32x128xf32>
    %52 = tpu.matmul %50, %51, %cst_19 {dimension_numbers = #tpu.dot_dimension_numbers<[1], [0], [0], [1], [0, 0, 1, 1], [], []>} : vector<32x384xf32>, vector<384x128xf32>, vector<32x128xf32> -> vector<32x128xf32>
    %c0_20 = arith.constant 0 : index
    %c0_21 = arith.constant 0 : index
    %53 = vector.load %arg5[%c0_20, %c0_21] : memref<1x128xf32, #tpu.memory_space<vmem>>, vector<1x128xf32>
    %54 = vector.broadcast %53 : vector<1x128xf32> to vector<32x128xf32>
    %55 = arith.addf %52, %54 : vector<32x128xf32>
    %56 = arith.addf %55, %0 : vector<32x128xf32>
    %cst_22 = arith.constant 0.000000e+00 : f32
    %57 = vector.broadcast %cst_22 : f32 to vector<32x128xf32>
    %58 = arith.maximumf %56, %57 : vector<32x128xf32>
    %c0_23 = arith.constant 0 : index
    %c0_24 = arith.constant 0 : index
    %59 = vector.load %arg6[%c0_23, %c0_24] : memref<32x128xf32, #tpu.memory_space<vmem>>, vector<32x128xf32>
    tpu.vector_store %arg6[%c0_23, %c0_24], %58 {strides = array<i32>} : memref<32x128xf32, #tpu.memory_space<vmem>>, vector<32x128xf32>,
    return
  }
  func.func @transform_0(%arg0: i32) -> (i32, i32) {
    %c0_i32 = arith.constant 0 : i32
    %c0_i32_0 = arith.constant 0 : i32
    return %arg0, %c0_i32 : i32, i32
  }
  func.func @transform_1(%arg0: i32) -> (i32, i32) {
    %c0_i32 = arith.constant 0 : i32
    %c0_i32_0 = arith.constant 0 : i32
    %c0_i32_1 = arith.constant 0 : i32
    return %c0_i32, %c0_i32_0 : i32, i32
  }
  func.func @transform_2(%arg0: i32) -> (i32, i32) {
    %c0_i32 = arith.constant 0 : i32
    %c0_i32_0 = arith.constant 0 : i32
    %c0_i32_1 = arith.constant 0 : i32
    return %c0_i32, %c0_i32_0 : i32, i32
  }
  func.func @transform_3(%arg0: i32) -> (i32, i32) {
    %c0_i32 = arith.constant 0 : i32
    %c0_i32_0 = arith.constant 0 : i32
    %c0_i32_1 = arith.constant 0 : i32
    return %c0_i32, %c0_i32_0 : i32, i32
  }
  func.func @transform_4(%arg0: i32) -> (i32, i32) {
    %c0_i32 = arith.constant 0 : i32
    %c0_i32_0 = arith.constant 0 : i32
    %c0_i32_1 = arith.constant 0 : i32
    return %c0_i32, %c0_i32_0 : i32, i32
  }
  func.func @transform_5(%arg0: i32) -> (i32, i32) {
    %c0_i32 = arith.constant 0 : i32
    %c0_i32_0 = arith.constant 0 : i32
    return %arg0, %c0_i32 : i32, i32
  }
}

</mosaic_0001>

<llo_original>
// kernel: tpu_custom_call.1
$region0: #{tpu_custom_call.1}
  #allocation0 [shape = 'u32[]', space=smem, size = 0x4, offset = 0x4, fixed_abs, tag = 'smem constant byte address 0x4 - core index']
  #allocation1 [shape = 'u32[144,128]{1,0:T(1,128)}', space=vmem, size = 0x12000, scoped, tag = 'internal scratch']
  %s0 = inlined_call_operand.hbm [shape: f32[64,128], index: 0, kind: input, shape index: {}]
  %s1 = inlined_call_operand.hbm [shape: f32[384,128], index: 1, kind: input, shape index: {}]
  %s2 = inlined_call_operand.vmem [shape: f32[1,128], index: 2, kind: input, shape index: {}]
  %s3 = inlined_call_operand.hbm [shape: f32[384,128], index: 3, kind: input, shape index: {}]
  %s4 = inlined_call_operand.vmem [shape: f32[1,128], index: 4, kind: input, shape index: {}]
  %s5 = inlined_call_operand.hbm [shape: f32[64,128], index: 5, kind: output, shape index: {}]
  %s6 = sld [smem:[#allocation0]]
  $region65: #{tpu_custom_call.1} parent=0
    _
  %s8 = ssub.s32 1, %s6
  %s9 = scalar_select 0, %s8, %s6
  $region1: #{tpu_custom_call.1} parent=0
    #allocation2 [shape = 'u8[32768]{0}', space=vmem, size = 0x8000, scoped, tag = 'input window, operand 0']
    #allocation3 [shape = 's32[2]{0}', space=sflag, size = 0x8, scoped, tag = 'scoped memory for tpu_custom_call.1']
    #allocation4 [shape = 's32[2]{0}', space=sflag, size = 0x8, scoped, tag = 'scoped memory for tpu_custom_call.1']
    #allocation5 [shape = 'u8[196608]{0}', space=vmem, size = 0x30000, scoped, tag = 'input window, operand 1, single buffered']
    #allocation6 [shape = 's32[1]{0}', space=sflag, size = 0x4, scoped, tag = 'scoped memory for tpu_custom_call.1']
    #allocation7 [shape = 'u8[196608]{0}', space=vmem, size = 0x30000, scoped, tag = 'input window, operand 3, single buffered']
    #allocation8 [shape = 'u8[32768]{0}', space=vmem, size = 0x8000, scoped, tag = 'output window, operand 0']
    %10 = vsyncpa [#allocation3], 0
    %s11 = scalar_lea.sflag [#allocation3], 1
    %12 = vsyncpa %s11, 0
    %13 = vsyncpa [#allocation6], 0
    %14 = vsyncpa [#allocation4], 0
    %s15 = scalar_lea.sflag [#allocation4], 1
    %16 = vsyncpa %s15, 0
    loop: start=0, step=1, limit=4
    $region2: #{tpu_custom_call.1} parent=1 // loop_pre_header
      _
    $region3: #{tpu_custom_call.1} parent=1 // loop_header
      %s18 = sphi 0, %s22
      %p19 = scmp.ge.s32.totalorder %s18, 4
      %s28 = sphi 0, %s30
      %s31 = sphi 0, %s28
      %s32 = sphi 0, %s31
      %s48 = sphi 0, %s32
      %s52 = sphi 0, %s52
      %s54 = sphi 0, %s52
      %s55 = sphi 0, %s54
      %s69 = sphi 0, %s55
      %s73 = sphi 0, %s73
      %s75 = sphi 0, %s73
      %s76 = sphi 0, %s75
      %s90 = sphi 0, %s76
      %s94 = sphi 0, %s94
      %s96 = sphi 0, %s94
      %s97 = sphi 0, %s96
      %s111 = sphi 0, %s97
      %s115 = sphi 0, %s115
      %s117 = sphi 0, %s115
      %s118 = sphi 0, %s117
      %s132 = sphi 0, %s118
      %s138 = sphi 0, %s140
      %s141 = sphi 0, %s138
      %s142 = sphi 0, %s141
      %s158 = sphi 0, %s142
    $region4: #{tpu_custom_call.1} parent=1 // loop_header_branch
      %21 = sbr.rel (%p19) target = $region8
    $region5: #{tpu_custom_call.1} parent=1 // loop_body
      %s23 = ssub.s32 %s18, 1
      %s24 = ssub.s32 %s18, 2
      %s25 = sadd.s32 %s18, 1
      %s26 = ssub.s32 %s18, %s25
      %p27 = scmp.eq.s32.totalorder %s26, 0
      %s29 = sadd.s32 %s28, 1
      %s30 = scalar_select %p27, %s28, %s29
      %p33 = pneg %p27
      %p34 = scmp.eq.s32.totalorder %s18, 1
      %p35 = por %p33, %p34
      %p36 = scmp.ne.s32.totalorder %s28, %s31
      %p37 = scmp.eq.s32.totalorder %s18, 0
      %p38 = por %p36, %p37
      %p39 = scmp.ne.s32.totalorder %s28, %s31
      %p40 = scmp.eq.s32.totalorder %s23, 1
      %p41 = por %p39, %p40
      %p42 = scmp.ne.s32.totalorder %s31, %s32
      %p43 = scmp.eq.s32.totalorder %s23, 0
      %p44 = por %p42, %p43
      %p45 = scmp.ne.s32.totalorder %s31, %s32
      %p46 = scmp.eq.s32.totalorder %s24, 1
      %p47 = por %p45, %p46
      %p49 = scmp.ne.s32.totalorder %s32, %s48
      %p50 = scmp.eq.s32.totalorder %s24, 0
      %p51 = por %p49, %p50
      %s53 = sadd.s32 %s52, 1
      %p56 = scmp.eq.s32.totalorder %s18, 1
      %p57 = scmp.ne.s32.totalorder %s52, %s54
      %p58 = scmp.eq.s32.totalorder %s18, 0
      %p59 = por %p57, %p58
      %p60 = scmp.ne.s32.totalorder %s52, %s54
      %p61 = scmp.eq.s32.totalorder %s23, 1
      %p62 = por %p60, %p61
      %p63 = scmp.ne.s32.totalorder %s54, %s55
      %p64 = scmp.eq.s32.totalorder %s23, 0
      %p65 = por %p63, %p64
      %p66 = scmp.ne.s32.totalorder %s54, %s55
      %p67 = scmp.eq.s32.totalorder %s24, 1
      %p68 = por %p66, %p67
      %p70 = scmp.ne.s32.totalorder %s55, %s69
      %p71 = scmp.eq.s32.totalorder %s24, 0
      %p72 = por %p70, %p71
      %s74 = sadd.s32 %s73, 1
      %p77 = scmp.eq.s32.totalorder %s18, 1
      %p78 = scmp.ne.s32.totalorder %s73, %s75
      %p79 = scmp.eq.s32.totalorder %s18, 0
      %p80 = por %p78, %p79
      %p81 = scmp.ne.s32.totalorder %s73, %s75
      %p82 = scmp.eq.s32.totalorder %s23, 1
      %p83 = por %p81, %p82
      %p84 = scmp.ne.s32.totalorder %s75, %s76
      %p85 = scmp.eq.s32.totalorder %s23, 0
      %p86 = por %p84, %p85
      %p87 = scmp.ne.s32.totalorder %s75, %s76
      %p88 = scmp.eq.s32.totalorder %s24, 1
      %p89 = por %p87, %p88
      %p91 = scmp.ne.s32.totalorder %s76, %s90
      %p92 = scmp.eq.s32.totalorder %s24, 0
      %p93 = por %p91, %p92
      %s95 = sadd.s32 %s94, 1
      %p98 = scmp.eq.s32.totalorder %s18, 1
      %p99 = scmp.ne.s32.totalorder %s94, %s96
      %p100 = scmp.eq.s32.totalorder %s18, 0
      %p101 = por %p99, %p100
      %p102 = scmp.ne.s32.totalorder %s94, %s96
      %p103 = scmp.eq.s32.totalorder %s23, 1
      %p104 = por %p102, %p103
      %p105 = scmp.ne.s32.totalorder %s96, %s97
      %p106 = scmp.eq.s32.totalorder %s23, 0
      %p107 = por %p105, %p106
      %p108 = scmp.ne.s32.totalorder %s96, %s97
      %p109 = scmp.eq.s32.totalorder %s24, 1
      %p110 = por %p108, %p109
      %p112 = scmp.ne.s32.totalorder %s97, %s111
      %p113 = scmp.eq.s32.totalorder %s24, 0
      %p114 = por %p112, %p113
      %s116 = sadd.s32 %s115, 1
      %p119 = scmp.eq.s32.totalorder %s18, 1
      %p120 = scmp.ne.s32.totalorder %s115, %s117
      %p121 = scmp.eq.s32.totalorder %s18, 0
      %p122 = por %p120, %p121
      %p123 = scmp.ne.s32.totalorder %s115, %s117
      %p124 = scmp.eq.s32.totalorder %s23, 1
      %p125 = por %p123, %p124
      %p126 = scmp.ne.s32.totalorder %s117, %s118
      %p127 = scmp.eq.s32.totalorder %s23, 0
      %p128 = por %p126, %p127
      %p129 = scmp.ne.s32.totalorder %s117, %s118
      %p130 = scmp.eq.s32.totalorder %s24, 1
      %p131 = por %p129, %p130
      %p133 = scmp.ne.s32.totalorder %s118, %s132
      %p134 = scmp.eq.s32.totalorder %s24, 0
      %p135 = por %p133, %p134
      %s136 = ssub.s32 %s18, %s25
      %p137 = scmp.eq.s32.totalorder %s136, 0
      %s139 = sadd.s32 %s138, 1
      %s140 = scalar_select %p137, %s138, %s139
      %p143 = pneg %p137
      %p144 = scmp.eq.s32.totalorder %s18, 1
      %p145 = por %p143, %p144
      %p146 = scmp.ne.s32.totalorder %s138, %s141
      %p147 = scmp.eq.s32.totalorder %s18, 0
      %p148 = por %p146, %p147
      %p149 = scmp.ne.s32.totalorder %s138, %s141
      %p150 = scmp.eq.s32.totalorder %s23, 1
      %p151 = por %p149, %p150
      %p152 = scmp.ne.s32.totalorder %s141, %s142
      %p153 = scmp.eq.s32.totalorder %s23, 0
      %p154 = por %p152, %p153
      %p155 = scmp.ne.s32.totalorder %s141, %s142
      %p156 = scmp.eq.s32.totalorder %s24, 1
      %p157 = por %p155, %p156
      %p159 = scmp.ne.s32.totalorder %s142, %s158
      %p160 = scmp.eq.s32.totalorder %s24, 0
      %p161 = por %p159, %p160
      %p162 = scmp.le.s32.totalorder 1, %s18
      %p163 = scmp.lt.s32.totalorder %s18, 3
      %p164 = pnand %p162, %p163
      %p165 = pneg %p164
      // Predicated region
      $region9: #{tpu_custom_call.1} parent=5 // pred_check
        _
      $region10: #{tpu_custom_call.1} parent=5 // pred_check_branch
        %167 = sbr.rel (%p164) target = $region12
      $region11: #{tpu_custom_call.1} parent=5 // pred_region
        %s168 = ssub.s32 %s18, 1
        // Predicated region
        $region13: #{tpu_custom_call.1} parent=11 // pred_check
          %p169 = pneg %p65
        $region14: #{tpu_custom_call.1} parent=11 // pred_check_branch
          %171 = sbr.rel (%p169) target = $region16
        $region15: #{tpu_custom_call.1} parent=11 // pred_region
          %s173 = ssub.s32 6144, 6144
          %174 = vsyncadd [#allocation6], %s173
          %s175 = sshll.u32 [#allocation5], 4
          %s176 = int_to_ptr.vmem [resolvable:$true] %s175
          %181 = dma.hbm_to_vmem [thread:$0]  %s1, 6144, %s176, [#allocation6], 128, 128, 8
        $region16: #{tpu_custom_call.1} parent=11 // pred_fallthru
          _
        // Predicated region
        $region17: #{tpu_custom_call.1} parent=11 // pred_check
          %p182 = pneg %p86
        $region18: #{tpu_custom_call.1} parent=11 // pred_check_branch
          %184 = sbr.rel (%p182) target = $region20
        $region19: #{tpu_custom_call.1} parent=11 // pred_region
          _
        $region20: #{tpu_custom_call.1} parent=11 // pred_fallthru
          _
        // Predicated region
        $region21: #{tpu_custom_call.1} parent=11 // pred_check
          %p185 = pneg %p107
        $region22: #{tpu_custom_call.1} parent=11 // pred_check_branch
          %187 = sbr.rel (%p185) target = $region24
        $region23: #{tpu_custom_call.1} parent=11 // pred_region
          %s189 = ssub.s32 6144, 6144
          %190 = vsyncadd [#allocation6], %s189
          %s191 = sshll.u32 [#allocation7], 4
          %s192 = int_to_ptr.vmem [resolvable:$true] %s191
          %197 = dma.hbm_to_vmem [thread:$0]  %s3, 6144, %s192, [#allocation6], 128, 128, 8
        $region24: #{tpu_custom_call.1} parent=11 // pred_fallthru
          _
        // Predicated region
        $region25: #{tpu_custom_call.1} parent=11 // pred_check
          %p198 = pneg %p128
        $region26: #{tpu_custom_call.1} parent=11 // pred_check_branch
          %200 = sbr.rel (%p198) target = $region28
        $region27: #{tpu_custom_call.1} parent=11 // pred_region
          _
        $region28: #{tpu_custom_call.1} parent=11 // pred_fallthru
          _
      $region12: #{tpu_custom_call.1} parent=5 // pred_fallthru
        _
      %p201 = scmp.lt.s32.totalorder %s18, 2
      // Predicated region
      $region29: #{tpu_custom_call.1} parent=5 // pred_check
        %p202 = pneg %p201
      $region30: #{tpu_custom_call.1} parent=5 // pred_check_branch
        %204 = sbr.rel (%p202) target = $region32
      $region31: #{tpu_custom_call.1} parent=5 // pred_region
        // Predicated region
        $region33: #{tpu_custom_call.1} parent=31 // pred_check
          %p205 = pneg %p38
        $region34: #{tpu_custom_call.1} parent=31 // pred_check_branch
          %207 = sbr.rel (%p205) target = $region36
        $region35: #{tpu_custom_call.1} parent=31 // pred_region
          %s208 = sand.u32 %s28, 1
          %s209 = scalar_lea.sflag [#allocation3], %s208
          %s210 = sand.u32 %s28, 1
          %s211 = smul.addr %s210, 32
          %s212 = scalar_lea.vmem [#allocation2], %s211
          %s213 = smul.u32 4, %s18
          %s215 = ssub.s32 512, 512
          %216 = vsyncadd %s209, %s215
          %s217 = smul.addr %s213, 128
          %s218 = scalar_lea.hbm %s0, %s217
          %s219 = sshll.u32 %s212, 4
          %s220 = int_to_ptr.vmem [resolvable:$true] %s219
          %225 = dma.hbm_to_vmem [thread:$0]  %s218, 512, %s220, %s209, 128, 128, 8
        $region36: #{tpu_custom_call.1} parent=31 // pred_fallthru
          _
      $region32: #{tpu_custom_call.1} parent=5 // pred_fallthru
        _
      %p226 = scmp.le.s32.totalorder 1, %s18
      %p227 = scmp.lt.s32.totalorder %s18, 3
      %p228 = pnand %p226, %p227
      %p229 = pneg %p228
      // Predicated region
      $region37: #{tpu_custom_call.1} parent=5 // pred_check
        _
      $region38: #{tpu_custom_call.1} parent=5 // pred_check_branch
        %231 = sbr.rel (%p228) target = $region40
      $region39: #{tpu_custom_call.1} parent=5 // pred_region
        %s232 = ssub.s32 %s18, 1
        %s233 = sand.u32 %s31, 1
        %s234 = scalar_lea.sflag [#allocation3], %s233
        %s235 = sand.u32 %s31, 1
        %s236 = smul.addr %s235, 32
        %s237 = scalar_lea.vmem [#allocation2], %s236
        // Predicated region
        $region41: #{tpu_custom_call.1} parent=39 // pred_check
          %p238 = pneg %p44
        $region42: #{tpu_custom_call.1} parent=39 // pred_check_branch
          %240 = sbr.rel (%p238) target = $region44
        $region43: #{tpu_custom_call.1} parent=39 // pred_region
          %241 = dma.done %s234, 512
        $region44: #{tpu_custom_call.1} parent=39 // pred_fallthru
          _
        // Predicated region
        $region45: #{tpu_custom_call.1} parent=39 // pred_check
          %p242 = pneg %p65
        $region46: #{tpu_custom_call.1} parent=39 // pred_check_branch
          %244 = sbr.rel (%p242) target = $region48
        $region47: #{tpu_custom_call.1} parent=39 // pred_region
          %245 = dma.done [#allocation6], 6144
        $region48: #{tpu_custom_call.1} parent=39 // pred_fallthru
          _
        // Predicated region
        $region49: #{tpu_custom_call.1} parent=39 // pred_check
          %p246 = pneg %p107
        $region50: #{tpu_custom_call.1} parent=39 // pred_check_branch
          %248 = sbr.rel (%p246) target = $region52
        $region51: #{tpu_custom_call.1} parent=39 // pred_region
          %249 = dma.done [#allocation6], 6144
        $region52: #{tpu_custom_call.1} parent=39 // pred_fallthru
          _
        %s250 = sand.u32 %s31, 1
        %s251 = scalar_lea.sflag [#allocation3], %s250
        %s252 = sand.u32 %s31, 1
        %s253 = smul.addr %s252, 32
        %s254 = scalar_lea.vmem [#allocation2], %s253
        %p255 = pneg %p44
        %p256 = pneg %p41
        %p257 = pneg %p65
        %p258 = pneg %p62
        %p259 = pneg %p86
        %p260 = pneg %p83
        %p261 = pneg %p107
        %p262 = pneg %p104
        %p263 = pneg %p128
        %p264 = pneg %p125
        %p265 = pneg %p154
        %p266 = pneg %p151
        %s267 = sand.u32 %s141, 1
        %s268 = scalar_lea.sflag [#allocation4], %s267
        %s269 = sand.u32 %s141, 1
        %s270 = smul.addr %s269, 32
        %s271 = scalar_lea.vmem [#allocation8], %s270
        %s272 = smul.u32 4, %s23
        %s273 = smul.u32 4, %s23
        %v274 = vld [vmem:[%s237] sm:$0xff]
        %v275 = vld [vmem:[%s237 + $0x8] sm:$0xff]
        %v276 = vld [vmem:[%s237 + $0x10] sm:$0xff]
        %v277 = vld [vmem:[%s237 + $0x18] sm:$0xff]
        %v278 = vlaneseq
        %v279 = vshrl.u32 %v278, 7
        %v280 = vadd.s32 %v279, 8
        %v281 = vadd.s32 %v279, 16
        %v282 = vadd.s32 %v279, 24
        %vm283 = vcmp.lt.s32.totalorder %v279, 0
        %v284 = vsub.s32 0, %v279
        %v285 = vsel %vm283, %v284, %v279
        %v286 = vshrl.u32 %v285, 4
        %v287 = vand.u32 %v285, 15
        %v288 = vsub.s32 0, %v287
        %v289 = vsel %vm283, %v288, %v287
        %vm290 = vcmp.lt.s32.totalorder %v280, 0
        %v291 = vsub.s32 0, %v280
        %v292 = vsel %vm290, %v291, %v280
        %v293 = vshrl.u32 %v292, 4
        %v294 = vand.u32 %v292, 15
        %v295 = vsub.s32 0, %v294
        %v296 = vsel %vm290, %v295, %v294
        %vm297 = vcmp.lt.s32.totalorder %v281, 0
        %v298 = vsub.s32 0, %v281
        %v299 = vsel %vm297, %v298, %v281
        %v300 = vshrl.u32 %v299, 4
        %v301 = vand.u32 %v299, 15
        %v302 = vsub.s32 0, %v301
        %v303 = vsel %vm297, %v302, %v301
        %vm304 = vcmp.lt.s32.totalorder %v282, 0
        %v305 = vsub.s32 0, %v282
        %v306 = vsel %vm304, %v305, %v282
        %v307 = vshrl.u32 %v306, 4
        %v308 = vand.u32 %v306, 15
        %v309 = vsub.s32 0, %v308
        %v310 = vsel %vm304, %v309, %v308
        %vm311 = vcmp.ne.s32.totalorder %v289, 0
        %vm312 = vcmp.ne.s32.totalorder %v296, 0
        %vm313 = vcmp.ne.s32.totalorder %v303, 0
        %vm314 = vcmp.ne.s32.totalorder %v310, 0
        %vm315 = vcmp.lt.s32.totalorder %v289, 0
        %vm316 = vcmp.lt.s32.totalorder %v296, 0
        %vm317 = vcmp.lt.s32.totalorder %v303, 0
        %vm318 = vcmp.lt.s32.totalorder %v310, 0
        %vm319 = vmand %vm315, %vm311
        %vm320 = vmand %vm316, %vm312
        %vm321 = vmand %vm317, %vm313
        %vm322 = vmand %vm318, %vm314
        %v323 = vadd.s32 %v289, 16
        %v324 = vadd.s32 %v296, 16
        %v325 = vadd.s32 %v303, 16
        %v326 = vadd.s32 %v310, 16
        %v327 = vsel %vm319, %v323, %v289
        %v328 = vsel %vm320, %v324, %v296
        %v329 = vsel %vm321, %v325, %v303
        %v330 = vsel %vm322, %v326, %v310
        %vm331 = vcmp.gt.s32.totalorder %v327, 0
        %vm332 = vcmp.gt.s32.totalorder %v328, 0
        %vm333 = vcmp.gt.s32.totalorder %v329, 0
        %vm334 = vcmp.gt.s32.totalorder %v330, 0
        %vm335 = vcmp.lt.s32.totalorder %v327, 15
        %vm336 = vcmp.lt.s32.totalorder %v328, 15
        %vm337 = vcmp.lt.s32.totalorder %v329, 15
        %vm338 = vcmp.lt.s32.totalorder %v330, 15
        %v339 = vrot.slane %v274, 7
        %v340 = vrot.slane %v275, 7
        %v341 = vrot.slane %v276, 7
        %v342 = vrot.slane %v277, 7
        %vm343 = vcmp.lt.s32.totalorder %v279, 1
        %v344 = vsel %vm343, %v341, %v342
        %v345 = vsel %vm343, %v340, %v341
        %v346 = vsel %vm343, %v339, %v340
        %v347 = vsel %vm343, %v342, %v339
        %v348 = vsel %vm331, 1, 0
        %v349 = vsel %vm332, 1, 0
        %v350 = vsel %vm333, 1, 0
        %v351 = vsel %vm334, 1, 0
        %vm352 = vcmp.eq.s32.totalorder %v348, 1
        %vm353 = vcmp.eq.s32.totalorder %v349, 1
        %vm354 = vcmp.eq.s32.totalorder %v350, 1
        %vm355 = vcmp.eq.s32.totalorder %v351, 1
        %v356 = vsel %vm352, %v347, 0.0
        %v357 = vsel %vm353, %v346, 0.0
        %v358 = vsel %vm354, %v345, 0.0
        %v359 = vsel %vm355, %v344, 0.0
        %v360 = vrot.slane %v274, 1
        %v361 = vrot.slane %v275, 1
        %v362 = vrot.slane %v276, 1
        %v363 = vrot.slane %v277, 1
        %vm364 = vcmp.lt.s32.totalorder %v279, 7
        %v365 = vsel %vm364, %v362, %v363
        %v366 = vsel %vm364, %v361, %v362
        %v367 = vsel %vm364, %v360, %v361
        %v368 = vsel %vm364, %v363, %v360
        %v369 = vsel %vm335, 1, 0
        %v370 = vsel %vm336, 1, 0
        %v371 = vsel %vm337, 1, 0
        %v372 = vsel %vm338, 1, 0
        %vm373 = vcmp.eq.s32.totalorder %v369, 1
        %vm374 = vcmp.eq.s32.totalorder %v370, 1
        %vm375 = vcmp.eq.s32.totalorder %v371, 1
        %vm376 = vcmp.eq.s32.totalorder %v372, 1
        %v377 = vsel %vm373, %v367, 0.0
        %v378 = vsel %vm374, %v366, 0.0
        %v379 = vsel %vm375, %v365, 0.0
        %v380 = vsel %vm376, %v368, 0.0
        %v381 = vld [vmem:[#allocation5] sm:$0xff]
        %v382 = vld [vmem:[#allocation5 + $0x8] sm:$0xff]
        %v383 = vld [vmem:[#allocation5 + $0x10] sm:$0xff]
        %v384 = vld [vmem:[#allocation5 + $0x18] sm:$0xff]
        %v385 = vld [vmem:[#allocation5 + $0x20] sm:$0xff]
        %v386 = vld [vmem:[#allocation5 + $0x28] sm:$0xff]
        %v387 = vld [vmem:[#allocation5 + $0x30] sm:$0xff]
        %v388 = vld [vmem:[#allocation5 + $0x38] sm:$0xff]
        %v389 = vld [vmem:[#allocation5 + $0x40] sm:$0xff]
        %v390 = vld [vmem:[#allocation5 + $0x48] sm:$0xff]
        %v391 = vld [vmem:[#allocation5 + $0x50] sm:$0xff]
        %v392 = vld [vmem:[#allocation5 + $0x58] sm:$0xff]
        %v393 = vld [vmem:[#allocation5 + $0x60] sm:$0xff]
        %v394 = vld [vmem:[#allocation5 + $0x68] sm:$0xff]
        %v395 = vld [vmem:[#allocation5 + $0x70] sm:$0xff]
        %v396 = vld [vmem:[#allocation5 + $0x78] sm:$0xff]
        %v397 = vld [vmem:[#allocation5 + $0x80] sm:$0xff]
        %v398 = vld [vmem:[#allocation5 + $0x88] sm:$0xff]
        %v399 = vld [vmem:[#allocation5 + $0x90] sm:$0xff]
        %v400 = vld [vmem:[#allocation5 + $0x98] sm:$0xff]
        %v401 = vld [vmem:[#allocation5 + $0xa0] sm:$0xff]
        %v402 = vld [vmem:[#allocation5 + $0xa8] sm:$0xff]
        %v403 = vld [vmem:[#allocation5 + $0xb0] sm:$0xff]
        %v404 = vld [vmem:[#allocation5 + $0xb8] sm:$0xff]
        %v405 = vld [vmem:[#allocation5 + $0xc0] sm:$0xff]
        %v406 = vld [vmem:[#allocation5 + $0xc8] sm:$0xff]
        %v407 = vld [vmem:[#allocation5 + $0xd0] sm:$0xff]
        %v408 = vld [vmem:[#allocation5 + $0xd8] sm:$0xff]
        %v409 = vld [vmem:[#allocation5 + $0xe0] sm:$0xff]
        %v410 = vld [vmem:[#allocation5 + $0xe8] sm:$0xff]
        %v411 = vld [vmem:[#allocation5 + $0xf0] sm:$0xff]
        %v412 = vld [vmem:[#allocation5 + $0xf8] sm:$0xff]
        %v413 = vld [vmem:[#allocation5 + $0x100] sm:$0xff]
        %v414 = vld [vmem:[#allocation5 + $0x108] sm:$0xff]
        %v415 = vld [vmem:[#allocation5 + $0x110] sm:$0xff]
        %v416 = vld [vmem:[#allocation5 + $0x118] sm:$0xff]
        %v417 = vld [vmem:[#allocation5 + $0x120] sm:$0xff]
        %v418 = vld [vmem:[#allocation5 + $0x128] sm:$0xff]
        %v419 = vld [vmem:[#allocation5 + $0x130] sm:$0xff]
        %v420 = vld [vmem:[#allocation5 + $0x138] sm:$0xff]
        %v421 = vld [vmem:[#allocation5 + $0x140] sm:$0xff]
        %v422 = vld [vmem:[#allocation5 + $0x148] sm:$0xff]
        %v423 = vld [vmem:[#allocation5 + $0x150] sm:$0xff]
        %v424 = vld [vmem:[#allocation5 + $0x158] sm:$0xff]
        %v425 = vld [vmem:[#allocation5 + $0x160] sm:$0xff]
        %v426 = vld [vmem:[#allocation5 + $0x168] sm:$0xff]
        %v427 = vld [vmem:[#allocation5 + $0x170] sm:$0xff]
        %v428 = vld [vmem:[#allocation5 + $0x178] sm:$0xff]
        %v429 = vld [vmem:[%s2] sm:$0x1]
        %v431 = vlaneseq
        %v432 = vshrl.u32 %v431, 7
        %v433 = vsub.s32 0, %v432
        %v434 = vrot.slane %v429, %v433
        %436 = vmatprep.subr.mxu0 0.0
        %437 = vmatpush1.msra.mxu0 %v381
        %438 = vmatprep.subr.mxu0 0.0
        %439 = vmatpush1.msra.mxu0 %v382
        %440 = vmatprep.subr.mxu0 0.0
        %441 = vmatpush1.msra.mxu0 %v383
        %442 = vmatprep.subr.mxu0 0.0
        %443 = vmatpush1.msra.mxu0 %v384
        %444 = vmatprep.subr.mxu0 0.0
        %445 = vmatpush1.msra.mxu0 %v385
        %446 = vmatprep.subr.mxu0 0.0
        %447 = vmatpush1.msra.mxu0 %v386
        %448 = vmatprep.subr.mxu0 0.0
        %449 = vmatpush1.msra.mxu0 %v387
        %450 = vmatprep.subr.mxu0 0.0
        %451 = vmatpush1.msra.mxu0 %v388
        %452 = vmatprep.subr.mxu0 0.0
        %453 = vmatpush1.msra.mxu0 %v389
        %454 = vmatprep.subr.mxu0 0.0
        %455 = vmatpush1.msra.mxu0 %v390
        %456 = vmatprep.subr.mxu0 0.0
        %457 = vmatpush1.msra.mxu0 %v391
        %458 = vmatprep.subr.mxu0 0.0
        %459 = vmatpush1.msra.mxu0 %v392
        %460 = vmatprep.subr.mxu0 0.0
        %461 = vmatpush1.msra.mxu0 %v393
        %462 = vmatprep.subr.mxu0 0.0
        %463 = vmatpush1.msra.mxu0 %v394
        %464 = vmatprep.subr.mxu0 0.0
        %465 = vmatpush1.msra.mxu0 %v395
        %466 = vmatprep.subr.mxu0 0.0
        %467 = vmatpush1.msra.mxu0 %v396
        %468 = vmatprep.subr.mxu0 0.0
        %469 = vmatpush1.msra.mxu0 %v397
        %470 = vmatprep.subr.mxu0 0.0
        %471 = vmatpush1.msra.mxu0 %v398
        %472 = vmatprep.subr.mxu0 0.0
        %473 = vmatpush1.msra.mxu0 %v399
        %474 = vmatprep.subr.mxu0 0.0
        %475 = vmatpush1.msra.mxu0 %v400
        %476 = vmatprep.subr.mxu0 0.0
        %477 = vmatpush1.msra.mxu0 %v401
        %478 = vmatprep.subr.mxu0 0.0
        %479 = vmatpush1.msra.mxu0 %v402
        %480 = vmatprep.subr.mxu0 0.0
        %481 = vmatpush1.msra.mxu0 %v403
        %482 = vmatprep.subr.mxu0 0.0
        %483 = vmatpush1.msra.mxu0 %v404
        %484 = vmatprep.subr.mxu0 0.0
        %485 = vmatpush1.msra.mxu0 %v405
        %486 = vmatprep.subr.mxu0 0.0
        %487 = vmatpush1.msra.mxu0 %v406
        %488 = vmatprep.subr.mxu0 0.0
        %489 = vmatpush1.msra.mxu0 %v407
        %490 = vmatprep.subr.mxu0 0.0
        %491 = vmatpush1.msra.mxu0 %v408
        %492 = vmatprep.subr.mxu0 0.0
        %493 = vmatpush1.msra.mxu0 %v409
        %494 = vmatprep.subr.mxu0 0.0
        %495 = vmatpush1.msra.mxu0 %v410
        %496 = vmatprep.subr.mxu0 0.0
        %497 = vmatpush1.msra.mxu0 %v411
        %498 = vmatprep.subr.mxu0 0.0
        %499 = vmatpush1.msra.mxu0 %v412
        %500 = vmatprep.mubr.f32.mxu0 %v274
        %501 = vmatmul.mubr.f32.gmra.mrb[0].mxu0 %v356
        %v502 = vpop.f32.mrb[0].mxu0
        %v503 = vadd.f32 %v434, %v502
        %v504 = vpop.f32.mrb[0].mxu0
        %505 = vmatprep.mubr.f32.mxu0 %v275
        %506 = vmatmul.mubr.f32.gmra.mrb[0].mxu0 %v357
        %v507 = vpop.f32.mrb[0].mxu0
        %v508 = vadd.f32 %v434, %v507
        %v509 = vpop.f32.mrb[0].mxu0
        %510 = vmatprep.mubr.f32.mxu0 %v276
        %511 = vmatmul.mubr.f32.gmra.mrb[0].mxu0 %v358
        %v512 = vpop.f32.mrb[0].mxu0
        %v513 = vadd.f32 %v434, %v512
        %v514 = vpop.f32.mrb[0].mxu0
        %515 = vmatprep.mubr.f32.mxu0 %v277
        %516 = vmatmul.mubr.f32.gmra.mrb[0].mxu0 %v359
        %v517 = vpop.f32.mrb[0].mxu0
        %v518 = vadd.f32 %v434, %v517
        %v519 = vpop.f32.mrb[0].mxu0
        %520 = vdwg.mxu0
        %521 = vmatprep.subr.mxu0 0.0
        %522 = vmatpush1.msra.mxu0 %v413
        %523 = vmatprep.subr.mxu0 0.0
        %524 = vmatpush1.msra.mxu0 %v414
        %525 = vmatprep.subr.mxu0 0.0
        %526 = vmatpush1.msra.mxu0 %v415
        %527 = vmatprep.subr.mxu0 0.0
        %528 = vmatpush1.msra.mxu0 %v416
        %529 = vmatprep.subr.mxu0 0.0
        %530 = vmatpush1.msra.mxu0 %v417
        %531 = vmatprep.subr.mxu0 0.0
        %532 = vmatpush1.msra.mxu0 %v418
        %533 = vmatprep.subr.mxu0 0.0
        %534 = vmatpush1.msra.mxu0 %v419
        %535 = vmatprep.subr.mxu0 0.0
        %536 = vmatpush1.msra.mxu0 %v420
        %537 = vmatprep.subr.mxu0 0.0
        %538 = vmatpush1.msra.mxu0 %v421
        %539 = vmatprep.subr.mxu0 0.0
        %540 = vmatpush1.msra.mxu0 %v422
        %541 = vmatprep.subr.mxu0 0.0
        %542 = vmatpush1.msra.mxu0 %v423
        %543 = vmatprep.subr.mxu0 0.0
        %544 = vmatpush1.msra.mxu0 %v424
        %545 = vmatprep.subr.mxu0 0.0
        %546 = vmatpush1.msra.mxu0 %v425
        %547 = vmatprep.subr.mxu0 0.0
        %548 = vmatpush1.msra.mxu0 %v426
        %549 = vmatprep.subr.mxu0 0.0
        %550 = vmatpush1.msra.mxu0 %v427
        %551 = vmatprep.subr.mxu0 0.0
        %552 = vmatpush1.msra.mxu0 %v428
        %553 = vmatprep.subr.mxu0 0.0
        %554 = vmatpush1.msra.mxu0 0.0
        %555 = vmatprep.subr.mxu0 0.0
        %556 = vmatpush1.msra.mxu0 0.0
        %557 = vmatprep.subr.mxu0 0.0
        %558 = vmatpush1.msra.mxu0 0.0
        %559 = vmatprep.subr.mxu0 0.0
        %560 = vmatpush1.msra.mxu0 0.0
        %561 = vmatprep.subr.mxu0 0.0
        %562 = vmatpush1.msra.mxu0 0.0
        %563 = vmatprep.subr.mxu0 0.0
        %564 = vmatpush1.msra.mxu0 0.0
        %565 = vmatprep.subr.mxu0 0.0
        %566 = vmatpush1.msra.mxu0 0.0
        %567 = vmatprep.subr.mxu0 0.0
        %568 = vmatpush1.msra.mxu0 0.0
        %569 = vmatprep.subr.mxu0 0.0
        %570 = vmatpush1.msra.mxu0 0.0
        %571 = vmatprep.subr.mxu0 0.0
        %572 = vmatpush1.msra.mxu0 0.0
        %573 = vmatprep.subr.mxu0 0.0
        %574 = vmatpush1.msra.mxu0 0.0
        %575 = vmatprep.subr.mxu0 0.0
        %576 = vmatpush1.msra.mxu0 0.0
        %577 = vmatprep.subr.mxu0 0.0
        %578 = vmatpush1.msra.mxu0 0.0
        %579 = vmatprep.subr.mxu0 0.0
        %580 = vmatpush1.msra.mxu0 0.0
        %581 = vmatprep.subr.mxu0 0.0
        %582 = vmatpush1.msra.mxu0 0.0
        %583 = vmatprep.subr.mxu0 0.0
        %584 = vmatpush1.msra.mxu0 0.0
        %585 = vmatprep.mubr.f32.mxu0 0.0
        %586 = vmatmul.mubr.f32.gmra.mrb[0].mxu0 %v377
        %v587 = vpop.f32.mrb[0].mxu0
        %v588 = vadd.f32 %v503, %v587
        %v589 = vpop.f32.mrb[0].mxu0
        %590 = vmatprep.mubr.f32.mxu0 0.0
        %591 = vmatmul.mubr.f32.gmra.mrb[0].mxu0 %v378
        %v592 = vpop.f32.mrb[0].mxu0
        %v593 = vadd.f32 %v508, %v592
        %v594 = vpop.f32.mrb[0].mxu0
        %595 = vmatprep.mubr.f32.mxu0 0.0
        %596 = vmatmul.mubr.f32.gmra.mrb[0].mxu0 %v379
        %v597 = vpop.f32.mrb[0].mxu0
        %v598 = vadd.f32 %v513, %v597
        %v599 = vpop.f32.mrb[0].mxu0
        %600 = vmatprep.mubr.f32.mxu0 0.0
        %601 = vmatmul.mubr.f32.gmra.mrb[0].mxu0 %v380
        %v602 = vpop.f32.mrb[0].mxu0
        %v603 = vadd.f32 %v518, %v602
        %v604 = vpop.f32.mrb[0].mxu0
        %605 = vdwg.mxu0
        %v606 = vmax.f32 %v588, 0.0
        %v607 = vmax.f32 %v593, 0.0
        %v608 = vmax.f32 %v598, 0.0
        %v609 = vmax.f32 %v603, 0.0
        %v610 = vrot.slane %v606, 7
        %v611 = vrot.slane %v607, 7
        %v612 = vrot.slane %v608, 7
        %v613 = vrot.slane %v609, 7
        %v614 = vsel %vm343, %v612, %v613
        %v615 = vsel %vm343, %v611, %v612
        %v616 = vsel %vm343, %v610, %v611
        %v617 = vsel %vm343, %v613, %v610
        %v618 = vsel %vm352, %v617, 0.0
        %v619 = vsel %vm353, %v616, 0.0
        %v620 = vsel %vm354, %v615, 0.0
        %v621 = vsel %vm355, %v614, 0.0
        %v622 = vrot.slane %v606, 1
        %v623 = vrot.slane %v607, 1
        %v624 = vrot.slane %v608, 1
        %v625 = vrot.slane %v609, 1
        %v626 = vsel %vm364, %v624, %v625
        %v627 = vsel %vm364, %v623, %v624
        %v628 = vsel %vm364, %v622, %v623
        %v629 = vsel %vm364, %v625, %v622
        %v630 = vsel %vm373, %v628, 0.0
        %v631 = vsel %vm374, %v627, 0.0
        %v632 = vsel %vm375, %v626, 0.0
        %v633 = vsel %vm376, %v629, 0.0
        %v634 = vld [vmem:[#allocation7] sm:$0xff]
        %v635 = vld [vmem:[#allocation7 + $0x8] sm:$0xff]
        %v636 = vld [vmem:[#allocation7 + $0x10] sm:$0xff]
        %v637 = vld [vmem:[#allocation7 + $0x18] sm:$0xff]
        %v638 = vld [vmem:[#allocation7 + $0x20] sm:$0xff]
        %v639 = vld [vmem:[#allocation7 + $0x28] sm:$0xff]
        %v640 = vld [vmem:[#allocation7 + $0x30] sm:$0xff]
        %v641 = vld [vmem:[#allocation7 + $0x38] sm:$0xff]
        %v642 = vld [vmem:[#allocation7 + $0x40] sm:$0xff]
        %v643 = vld [vmem:[#allocation7 + $0x48] sm:$0xff]
        %v644 = vld [vmem:[#allocation7 + $0x50] sm:$0xff]
        %v645 = vld [vmem:[#allocation7 + $0x58] sm:$0xff]
        %v646 = vld [vmem:[#allocation7 + $0x60] sm:$0xff]
        %v647 = vld [vmem:[#allocation7 + $0x68] sm:$0xff]
        %v648 = vld [vmem:[#allocation7 + $0x70] sm:$0xff]
        %v649 = vld [vmem:[#allocation7 + $0x78] sm:$0xff]
        %v650 = vld [vmem:[#allocation7 + $0x80] sm:$0xff]
        %v651 = vld [vmem:[#allocation7 + $0x88] sm:$0xff]
        %v652 = vld [vmem:[#allocation7 + $0x90] sm:$0xff]
        %v653 = vld [vmem:[#allocation7 + $0x98] sm:$0xff]
        %v654 = vld [vmem:[#allocation7 + $0xa0] sm:$0xff]
        %v655 = vld [vmem:[#allocation7 + $0xa8] sm:$0xff]
        %v656 = vld [vmem:[#allocation7 + $0xb0] sm:$0xff]
        %v657 = vld [vmem:[#allocation7 + $0xb8] sm:$0xff]
        %v658 = vld [vmem:[#allocation7 + $0xc0] sm:$0xff]
        %v659 = vld [vmem:[#allocation7 + $0xc8] sm:$0xff]
        %v660 = vld [vmem:[#allocation7 + $0xd0] sm:$0xff]
        %v661 = vld [vmem:[#allocation7 + $0xd8] sm:$0xff]
        %v662 = vld [vmem:[#allocation7 + $0xe0] sm:$0xff]
        %v663 = vld [vmem:[#allocation7 + $0xe8] sm:$0xff]
        %v664 = vld [vmem:[#allocation7 + $0xf0] sm:$0xff]
        %v665 = vld [vmem:[#allocation7 + $0xf8] sm:$0xff]
        %v666 = vld [vmem:[#allocation7 + $0x100] sm:$0xff]
        %v667 = vld [vmem:[#allocation7 + $0x108] sm:$0xff]
        %v668 = vld [vmem:[#allocation7 + $0x110] sm:$0xff]
        %v669 = vld [vmem:[#allocation7 + $0x118] sm:$0xff]
        %v670 = vld [vmem:[#allocation7 + $0x120] sm:$0xff]
        %v671 = vld [vmem:[#allocation7 + $0x128] sm:$0xff]
        %v672 = vld [vmem:[#allocation7 + $0x130] sm:$0xff]
        %v673 = vld [vmem:[#allocation7 + $0x138] sm:$0xff]
        %v674 = vld [vmem:[#allocation7 + $0x140] sm:$0xff]
        %v675 = vld [vmem:[#allocation7 + $0x148] sm:$0xff]
        %v676 = vld [vmem:[#allocation7 + $0x150] sm:$0xff]
        %v677 = vld [vmem:[#allocation7 + $0x158] sm:$0xff]
        %v678 = vld [vmem:[#allocation7 + $0x160] sm:$0xff]
        %v679 = vld [vmem:[#allocation7 + $0x168] sm:$0xff]
        %v680 = vld [vmem:[#allocation7 + $0x170] sm:$0xff]
        %v681 = vld [vmem:[#allocation7 + $0x178] sm:$0xff]
        %v682 = vld [vmem:[%s4] sm:$0x1]
        %v684 = vlaneseq
        %v685 = vshrl.u32 %v684, 7
        %v686 = vsub.s32 0, %v685
        %v687 = vrot.slane %v682, %v686
        %689 = vmatprep.subr.mxu0 0.0
        %690 = vmatpush1.msra.mxu0 %v634
        %691 = vmatprep.subr.mxu0 0.0
        %692 = vmatpush1.msra.mxu0 %v635
        %693 = vmatprep.subr.mxu0 0.0
        %694 = vmatpush1.msra.mxu0 %v636
        %695 = vmatprep.subr.mxu0 0.0
        %696 = vmatpush1.msra.mxu0 %v637
        %697 = vmatprep.subr.mxu0 0.0
        %698 = vmatpush1.msra.mxu0 %v638
        %699 = vmatprep.subr.mxu0 0.0
        %700 = vmatpush1.msra.mxu0 %v639
        %701 = vmatprep.subr.mxu0 0.0
        %702 = vmatpush1.msra.mxu0 %v640
        %703 = vmatprep.subr.mxu0 0.0
        %704 = vmatpush1.msra.mxu0 %v641
        %705 = vmatprep.subr.mxu0 0.0
        %706 = vmatpush1.msra.mxu0 %v642
        %707 = vmatprep.subr.mxu0 0.0
        %708 = vmatpush1.msra.mxu0 %v643
        %709 = vmatprep.subr.mxu0 0.0
        %710 = vmatpush1.msra.mxu0 %v644
        %711 = vmatprep.subr.mxu0 0.0
        %712 = vmatpush1.msra.mxu0 %v645
        %713 = vmatprep.subr.mxu0 0.0
        %714 = vmatpush1.msra.mxu0 %v646
        %715 = vmatprep.subr.mxu0 0.0
        %716 = vmatpush1.msra.mxu0 %v647
        %717 = vmatprep.subr.mxu0 0.0
        %718 = vmatpush1.msra.mxu0 %v648
        %719 = vmatprep.subr.mxu0 0.0
        %720 = vmatpush1.msra.mxu0 %v649
        %721 = vmatprep.subr.mxu0 0.0
        %722 = vmatpush1.msra.mxu0 %v650
        %723 = vmatprep.subr.mxu0 0.0
        %724 = vmatpush1.msra.mxu0 %v651
        %725 = vmatprep.subr.mxu0 0.0
        %726 = vmatpush1.msra.mxu0 %v652
        %727 = vmatprep.subr.mxu0 0.0
        %728 = vmatpush1.msra.mxu0 %v653
        %729 = vmatprep.subr.mxu0 0.0
        %730 = vmatpush1.msra.mxu0 %v654
        %731 = vmatprep.subr.mxu0 0.0
        %732 = vmatpush1.msra.mxu0 %v655
        %733 = vmatprep.subr.mxu0 0.0
        %734 = vmatpush1.msra.mxu0 %v656
        %735 = vmatprep.subr.mxu0 0.0
        %736 = vmatpush1.msra.mxu0 %v657
        %737 = vmatprep.subr.mxu0 0.0
        %738 = vmatpush1.msra.mxu0 %v658
        %739 = vmatprep.subr.mxu0 0.0
        %740 = vmatpush1.msra.mxu0 %v659
        %741 = vmatprep.subr.mxu0 0.0
        %742 = vmatpush1.msra.mxu0 %v660
        %743 = vmatprep.subr.mxu0 0.0
        %744 = vmatpush1.msra.mxu0 %v661
        %745 = vmatprep.subr.mxu0 0.0
        %746 = vmatpush1.msra.mxu0 %v662
        %747 = vmatprep.subr.mxu0 0.0
        %748 = vmatpush1.msra.mxu0 %v663
        %749 = vmatprep.subr.mxu0 0.0
        %750 = vmatpush1.msra.mxu0 %v664
        %751 = vmatprep.subr.mxu0 0.0
        %752 = vmatpush1.msra.mxu0 %v665
        %753 = vmatprep.mubr.f32.mxu0 %v606
        %754 = vmatmul.mubr.f32.gmra.mrb[0].mxu0 %v618
        %v755 = vpop.f32.mrb[0].mxu0
        %v756 = vadd.f32 %v687, %v755
        %v757 = vpop.f32.mrb[0].mxu0
        %758 = vmatprep.mubr.f32.mxu0 %v607
        %759 = vmatmul.mubr.f32.gmra.mrb[0].mxu0 %v619
        %v760 = vpop.f32.mrb[0].mxu0
        %v761 = vadd.f32 %v687, %v760
        %v762 = vpop.f32.mrb[0].mxu0
        %763 = vmatprep.mubr.f32.mxu0 %v608
        %764 = vmatmul.mubr.f32.gmra.mrb[0].mxu0 %v620
        %v765 = vpop.f32.mrb[0].mxu0
        %v766 = vadd.f32 %v687, %v765
        %v767 = vpop.f32.mrb[0].mxu0
        %768 = vmatprep.mubr.f32.mxu0 %v609
        %769 = vmatmul.mubr.f32.gmra.mrb[0].mxu0 %v621
        %v770 = vpop.f32.mrb[0].mxu0
        %v771 = vadd.f32 %v687, %v770
        %v772 = vpop.f32.mrb[0].mxu0
        %773 = vdwg.mxu0
        %774 = vmatprep.subr.mxu0 0.0
        %775 = vmatpush1.msra.mxu0 %v666
        %776 = vmatprep.subr.mxu0 0.0
        %777 = vmatpush1.msra.mxu0 %v667
        %778 = vmatprep.subr.mxu0 0.0
        %779 = vmatpush1.msra.mxu0 %v668
        %780 = vmatprep.subr.mxu0 0.0
        %781 = vmatpush1.msra.mxu0 %v669
        %782 = vmatprep.subr.mxu0 0.0
        %783 = vmatpush1.msra.mxu0 %v670
        %784 = vmatprep.subr.mxu0 0.0
        %785 = vmatpush1.msra.mxu0 %v671
        %786 = vmatprep.subr.mxu0 0.0
        %787 = vmatpush1.msra.mxu0 %v672
        %788 = vmatprep.subr.mxu0 0.0
        %789 = vmatpush1.msra.mxu0 %v673
        %790 = vmatprep.subr.mxu0 0.0
        %791 = vmatpush1.msra.mxu0 %v674
        %792 = vmatprep.subr.mxu0 0.0
        %793 = vmatpush1.msra.mxu0 %v675
        %794 = vmatprep.subr.mxu0 0.0
        %795 = vmatpush1.msra.mxu0 %v676
        %796 = vmatprep.subr.mxu0 0.0
        %797 = vmatpush1.msra.mxu0 %v677
        %798 = vmatprep.subr.mxu0 0.0
        %799 = vmatpush1.msra.mxu0 %v678
        %800 = vmatprep.subr.mxu0 0.0
        %801 = vmatpush1.msra.mxu0 %v679
        %802 = vmatprep.subr.mxu0 0.0
        %803 = vmatpush1.msra.mxu0 %v680
        %804 = vmatprep.subr.mxu0 0.0
        %805 = vmatpush1.msra.mxu0 %v681
        %806 = vmatprep.subr.mxu0 0.0
        %807 = vmatpush1.msra.mxu0 0.0
        %808 = vmatprep.subr.mxu0 0.0
        %809 = vmatpush1.msra.mxu0 0.0
        %810 = vmatprep.subr.mxu0 0.0
        %811 = vmatpush1.msra.mxu0 0.0
        %812 = vmatprep.subr.mxu0 0.0
        %813 = vmatpush1.msra.mxu0 0.0
        %814 = vmatprep.subr.mxu0 0.0
        %815 = vmatpush1.msra.mxu0 0.0
        %816 = vmatprep.subr.mxu0 0.0
        %817 = vmatpush1.msra.mxu0 0.0
        %818 = vmatprep.subr.mxu0 0.0
        %819 = vmatpush1.msra.mxu0 0.0
        %820 = vmatprep.subr.mxu0 0.0
        %821 = vmatpush1.msra.mxu0 0.0
        %822 = vmatprep.subr.mxu0 0.0
        %823 = vmatpush1.msra.mxu0 0.0
        %824 = vmatprep.subr.mxu0 0.0
        %825 = vmatpush1.msra.mxu0 0.0
        %826 = vmatprep.subr.mxu0 0.0
        %827 = vmatpush1.msra.mxu0 0.0
        %828 = vmatprep.subr.mxu0 0.0
        %829 = vmatpush1.msra.mxu0 0.0
        %830 = vmatprep.subr.mxu0 0.0
        %831 = vmatpush1.msra.mxu0 0.0
        %832 = vmatprep.subr.mxu0 0.0
        %833 = vmatpush1.msra.mxu0 0.0
        %834 = vmatprep.subr.mxu0 0.0
        %835 = vmatpush1.msra.mxu0 0.0
        %836 = vmatprep.subr.mxu0 0.0
        %837 = vmatpush1.msra.mxu0 0.0
        %838 = vmatprep.mubr.f32.mxu0 0.0
        %839 = vmatmul.mubr.f32.gmra.mrb[0].mxu0 %v630
        %v840 = vpop.f32.mrb[0].mxu0
        %v841 = vadd.f32 %v756, %v840
        %v842 = vpop.f32.mrb[0].mxu0
        %843 = vmatprep.mubr.f32.mxu0 0.0
        %844 = vmatmul.mubr.f32.gmra.mrb[0].mxu0 %v631
        %v845 = vpop.f32.mrb[0].mxu0
        %v846 = vadd.f32 %v761, %v845
        %v847 = vpop.f32.mrb[0].mxu0
        %848 = vmatprep.mubr.f32.mxu0 0.0
        %849 = vmatmul.mubr.f32.gmra.mrb[0].mxu0 %v632
        %v850 = vpop.f32.mrb[0].mxu0
        %v851 = vadd.f32 %v766, %v850
        %v852 = vpop.f32.mrb[0].mxu0
        %853 = vmatprep.mubr.f32.mxu0 0.0
        %854 = vmatmul.mubr.f32.gmra.mrb[0].mxu0 %v633
        %v855 = vpop.f32.mrb[0].mxu0
        %v856 = vadd.f32 %v771, %v855
        %v857 = vpop.f32.mrb[0].mxu0
        %858 = vdwg.mxu0
        %v859 = vadd.f32 %v841, %v274
        %v860 = vadd.f32 %v846, %v275
        %v861 = vadd.f32 %v851, %v276
        %v862 = vadd.f32 %v856, %v277
        %v863 = vmax.f32 %v859, 0.0
        %v864 = vmax.f32 %v860, 0.0
        %v865 = vmax.f32 %v861, 0.0
        %v866 = vmax.f32 %v862, 0.0
        %867 = vst [vmem:[%s271] sm:$0xff] %v863
        %868 = vst [vmem:[%s271 + $0x8] sm:$0xff] %v864
        %869 = vst [vmem:[%s271 + $0x10] sm:$0xff] %v865
        %870 = vst [vmem:[%s271 + $0x18] sm:$0xff] %v866
        %s871 = sand.u32 %s141, 1
        %s872 = scalar_lea.sflag [#allocation4], %s871
        %s873 = sand.u32 %s141, 1
        %s874 = smul.addr %s873, 32
        %s875 = scalar_lea.vmem [#allocation8], %s874
        // Predicated region
        $region53: #{tpu_custom_call.1} parent=39 // pred_check
          %p876 = pneg %p151
        $region54: #{tpu_custom_call.1} parent=39 // pred_check_branch
          %878 = sbr.rel (%p876) target = $region56
        $region55: #{tpu_custom_call.1} parent=39 // pred_region
          %s879 = smul.u32 4, %s23
          %s881 = ssub.s32 512, 512
          %882 = vsyncadd %s872, %s881
          %s883 = smul.addr %s879, 128
          %s884 = scalar_lea.hbm %s5, %s883
          %s885 = sshll.u32 %s875, 4
          %s886 = int_to_ptr.vmem [resolvable:$true] %s885
          %891 = dma.vmem_to_hbm [thread:$0]  %s886, 512, %s884, %s872, 128, 128, 8
        $region56: #{tpu_custom_call.1} parent=39 // pred_fallthru
          _
      $region40: #{tpu_custom_call.1} parent=5 // pred_fallthru
        _
      %p892 = scmp.le.s32.totalorder 2, %s18
      // Predicated region
      $region57: #{tpu_custom_call.1} parent=5 // pred_check
        %p893 = pneg %p892
      $region58: #{tpu_custom_call.1} parent=5 // pred_check_branch
        %895 = sbr.rel (%p893) target = $region60
      $region59: #{tpu_custom_call.1} parent=5 // pred_region
        %s896 = ssub.s32 %s18, 2
        // Predicated region
        $region61: #{tpu_custom_call.1} parent=59 // pred_check
          %p897 = pneg %p157
        $region62: #{tpu_custom_call.1} parent=59 // pred_check_branch
          %899 = sbr.rel (%p897) target = $region64
        $region63: #{tpu_custom_call.1} parent=59 // pred_region
          %s900 = sand.u32 %s142, 1
          %s901 = scalar_lea.sflag [#allocation4], %s900
          %s902 = sand.u32 %s142, 1
          %s903 = smul.addr %s902, 32
          %s904 = scalar_lea.vmem [#allocation8], %s903
          %905 = dma.done %s901, 512
        $region64: #{tpu_custom_call.1} parent=59 // pred_fallthru
          _
      $region60: #{tpu_custom_call.1} parent=5 // pred_fallthru
        _
    $region6: #{tpu_custom_call.1} parent=1 // loop_footer
      %s22 = sadd.s32 1, %s18
    $region7: #{tpu_custom_call.1} parent=1 // loop_footer_branch
      %17 = sbr.rel target = $region3
    $region8: #{tpu_custom_call.1} parent=1 // loop_exit
      _
    %906 = vsyncpa [#allocation3], 1
    %s907 = scalar_lea.sflag [#allocation3], 1
    %908 = vsyncpa %s907, 1
    %909 = vsyncpa [#allocation6], 1
    %910 = vsyncpa [#allocation4], 1
    %s911 = scalar_lea.sflag [#allocation4], 1
    %912 = vsyncpa %s911, 1

</llo_original>
